<compile_context>
chip_gen: v6e
topology: v6e:2x2x1
jax: 0.10.0
libtpu: 0.0.40
codegen_flags: <defaults>
</compile_context>

<pallas_src>
import functools

import jax
import jax.numpy as jnp
from jax.experimental import pallas as pl
from jax.experimental.pallas import tpu as pltpu

LANE = 128                 # TPU lane width
MIN_ROW_TILE = 8 * LANE    # 1024 rows -> (8,128) f32 vreg-tile aligned blocks
MAX_ROW_TILE = 16384       # rows per grid step (preds slab = C*TILE*4B <= 192 KiB)


def _round_up(x, m):
    return ((x + m - 1) // m) * m


def _num_tensorcores():
    """2 on multi-TensorCore chips (v7x-style), 1 elsewhere (v5e/v6e)."""
    try:
        kind = jax.devices()[0].device_kind.lower()
    except Exception:
        return 1
    return 2 if ("v7" in kind or "tpu7" in kind) else 1


def _focal_loss_kernel(preds_ref, labels_ref, alpha_ref, out_ref, *,
                       gamma, n_classes):
    """One grid step: a dense (rows_sub, 128) slab of rows, C classes stacked
    as a small static leading dim."""
    i = pl.program_id(1)   # inner reduction axis

    # Output block is resident across the inner axis -> per-row partial-sum
    # accumulator; the single final reduction happens in the wrapper.
    @pl.when(i == 0)
    def _():
        out_ref[...] = jnp.zeros_like(out_ref)

    x = preds_ref[...].astype(jnp.float32)   # (C, rows_sub, 128)
    lbl = labels_ref[...]                    # (rows_sub, 128) int32 (sentinel=C on pad)

    # log-softmax over the class dim: C-way elementwise max / exp / add on
    # full (rows_sub, 128) vregs (VPU + EUP; no cross-lane/sublane work).
    m = x[0]
    for k in range(1, n_classes):
        m = jnp.maximum(m, x[k])
    s = jnp.exp(x[0] - m)
    for k in range(1, n_classes):
        s = s + jnp.exp(x[k] - m)
    lse = m + jnp.log(s)                     # (rows_sub, 128)

    # Fused gather: one compare per class selects both log p at the label and
    # alpha at the label (alpha scalars live in SMEM).  Padded rows have the
    # sentinel label == n_classes -> no compare matches -> logp_g = 0,
    # p_g = 1, w = 0, alpha_g = 0 -> exact zero contribution, no mask needed.
    logp_g = jnp.zeros_like(lse)
    alpha_g = jnp.zeros_like(lse)
    for k in range(n_classes):
        eq_k = lbl == k
        logp_g = jnp.where(eq_k, x[k] - lse, logp_g)
        alpha_g = jnp.where(eq_k, alpha_ref[k], alpha_g)

    p_g = jnp.exp(logp_g)                    # exp only the gathered slab

    # (1 - p)^gamma: integer fast path (gamma=2 -> one VPU mul); clamp so a
    # float-exponent pow never sees a tiny negative (NaN guard; benign
    # deviation from the reference only when rounding pushes p_g above 1).
    one_minus_p = jnp.maximum(1.0 - p_g, 0.0)
    g_int = int(gamma)
    if float(gamma) == float(g_int) and 0 <= g_int <= 8:
        if g_int == 0:
            w = jnp.ones_like(one_minus_p)
        else:
            w = one_minus_p
            for _ in range(g_int - 1):
                w = w * one_minus_p
    else:
        w = jnp.power(one_minus_p, gamma)

    out_ref[...] += -alpha_g * w * logp_g


def focal_loss_pallas(preds, labels, alpha, gamma=2.0, size_average=True):
    """preds: (B, C) or (B, S, C) float; labels: (B,) or (B, S) int; alpha: (C,)."""
    C = preds.shape[-1]
    preds2 = preds.reshape(-1, C)
    labels2 = labels.reshape(-1).astype(jnp.int32)
    N = preds2.shape[0]

    if N == 0:  # guard: empty batch (mean would otherwise be NaN)
        return jnp.float32(0.0)

    n_cores = _num_tensorcores()

    # Size the row tile from N: aim for >=4 pipelined inner steps per core,
    # keep it a multiple of 1024 (whole (8,128) f32 tiles), clamp to VMEM-safe
    # range.  Padding is at most one tile.
    target = -(-N // (n_cores * 4))
    row_tile = min(MAX_ROW_TILE, max(MIN_ROW_TILE, _round_up(target, MIN_ROW_TILE)))
    n_pad = _round_up(N, n_cores * row_tile)
    n_inner = n_pad // (n_cores * row_tile)
    n_blocks = n_pad // LANE
    rows_sub = row_tile // LANE

    # Fused pad + transpose + reshape into the dense (C, n_pad//128, 128)
    # layout (single relayout copy, minimal padding).  Padded labels use the
    # out-of-range sentinel C so padded rows contribute exactly zero.
    preds_t = jnp.pad(preds2, ((0, n_pad - N), (0, 0))).T.reshape(C, n_blocks, LANE)
    labels_t = (jnp.full((n_pad,), C, jnp.int32).at[:N].set(labels2)
                .reshape(n_blocks, LANE))
    # TODO(synk): labels could be stored as int8 (upcast in-kernel) to shave
    # HBM bytes once bandwidth-bound; kept int32 for robustness.
    alpha_s = jnp.asarray(alpha, jnp.float32).reshape((C,))

    kernel = functools.partial(_focal_loss_kernel, gamma=float(gamma),
                               n_classes=int(C))

    partials = pl.pallas_call(
        kernel,
        out_shape=jax.ShapeDtypeStruct((n_cores * rows_sub, LANE), jnp.float32),
        grid=(n_cores, n_inner),
        in_specs=[
            pl.BlockSpec((C, rows_sub, LANE), lambda c, i: (0, c * n_inner + i, 0)),
            pl.BlockSpec((rows_sub, LANE), lambda c, i: (c * n_inner + i, 0)),
            pl.BlockSpec(memory_space=pltpu.MemorySpace.SMEM),   # alpha (C,) scalars
        ],
        out_specs=pl.BlockSpec((rows_sub, LANE), lambda c, i: (c, 0)),
        compiler_params=pltpu.CompilerParams(
            # On v7x switch the outer axis to pltpu.CORE_PARALLEL if profiling
            # shows one TensorCore idle; PARALLEL kept for portability.
            dimension_semantics=(pltpu.PARALLEL, pltpu.ARBITRARY)),
    )(preds_t, labels_t, alpha_s)

    total = jnp.sum(partials)          # single final tree-reduce in XLA
    if size_average:
        return total / N
    return total


def focal_loss_ref(preds, labels, alpha, gamma=2.0, size_average=True):
    """Pure-JAX reference mirroring the PyTorch forward."""
    C = preds.shape[-1]
    p2 = preds.reshape(-1, C).astype(jnp.float32)
    l2 = labels.reshape(-1).astype(jnp.int32)
    logp = jax.nn.log_softmax(p2, axis=-1)
    p = jnp.exp(logp)
    logp_g = jnp.take_along_axis(logp, l2[:, None], axis=1)[:, 0]
    p_g = jnp.take_along_axis(p, l2[:, None], axis=1)[:, 0]
    a_g = alpha[l2]
    loss = -a_g * jnp.power(1.0 - p_g, gamma) * logp_g
    return loss.mean() if size_average else loss.sum()


if __name__ == "__main__":
    # Module __init__ defaults: alpha=0.25, gamma=2, num_classes=3
    num_classes = 3
    gamma = 2.0
    alpha_scalar = 0.25
    alpha = jnp.zeros((num_classes,), jnp.float32)
    alpha = alpha.at[0].set(alpha_scalar)
    alpha = alpha.at[1:].set(1.0 - alpha_scalar)   # [0.25, 0.75, 0.75]

    # Small shapes: preds (B, S, C) = (2, 8, 3), labels (B, S) = (2, 8)
    key = jax.random.PRNGKey(0)
    k1, k2 = jax.random.split(key)
    preds = jax.random.normal(k1, (2, 8, num_classes), dtype=jnp.float32)
    labels = jax.random.randint(k2, (2, 8), 0, num_classes, dtype=jnp.int32)

    out = focal_loss_pallas(preds, labels, alpha, gamma=gamma, size_average=True)
    out = jax.block_until_ready(out)

    ref = focal_loss_ref(preds, labels, alpha, gamma=gamma, size_average=True)
    assert jnp.allclose(out, ref, atol=1e-5, rtol=1e-5), (out, ref)

    print("KERNEL_OK")
</pallas_src>

<mosaic_0001>
module attributes {stable_mosaic.version = 11 : i64} {
  func.func @_focal_loss_kernel(%arg0: i32, %arg1: i32, %arg2: memref<3x8x128xf32, #tpu.memory_space<vmem>>, %arg3: memref<8x128xi32, #tpu.memory_space<vmem>>, %arg4: memref<3xf32, #tpu.memory_space<smem>>, %arg5: memref<8x128xf32, #tpu.memory_space<vmem>>) attributes {dimension_semantics = [#tpu.dimension_semantics<parallel>, #tpu.dimension_semantics<arbitrary>], iteration_bounds = array<i64: 1, 1>, scalar_prefetch = 0 : i64, scratch_operands = 0 : i64, tpu.core_type = #tpu.core_type<tc>, window_params = [{transform_indices = @transform_0, window_bounds = array<i64: 3, 8, 128>}, {transform_indices = @transform_1, window_bounds = array<i64: 8, 128>}, {transform_indices = @transform_2, window_bounds = array<i64: 3>}, {transform_indices = @transform_3, window_bounds = array<i64: 8, 128>}]} {
    %c0_i32 = arith.constant 0 : i32
    %0 = arith.cmpi eq, %arg1, %c0_i32 : i32
    %1 = arith.extui %0 : i1 to i32
    %c0_i32_0 = arith.constant 0 : i32
    %2 = arith.cmpi ne, %1, %c0_i32_0 : i32
    scf.if %2 {
      %cst_15 = arith.constant 0.000000e+00 : f32
      %71 = vector.broadcast %cst_15 : f32 to vector<8x128xf32>
      %c0_16 = arith.constant 0 : index
      %c0_17 = arith.constant 0 : index
      %72 = vector.load %arg5[%c0_16, %c0_17] : memref<8x128xf32, #tpu.memory_space<vmem>>, vector<8x128xf32>
      tpu.vector_store %arg5[%c0_16, %c0_17], %71 {strides = array<i32>} : memref<8x128xf32, #tpu.memory_space<vmem>>, vector<8x128xf32>,
    } else {
    }
    %c0 = arith.constant 0 : index
    %c0_1 = arith.constant 0 : index
    %c0_2 = arith.constant 0 : index
    %3 = vector.load %arg2[%c0, %c0_1, %c0_2] : memref<3x8x128xf32, #tpu.memory_space<vmem>>, vector<3x8x128xf32>
    %c0_3 = arith.constant 0 : index
    %c0_4 = arith.constant 0 : index
    %4 = vector.load %arg3[%c0_3, %c0_4] : memref<8x128xi32, #tpu.memory_space<vmem>>, vector<8x128xi32>
    %5 = vector.extract_strided_slice %3 {offsets = [0, 0, 0], sizes = [1, 8, 128], strides = [1, 1, 1]} : vector<3x8x128xf32> to vector<1x8x128xf32>
    %6 = vector.shape_cast %5 : vector<1x8x128xf32> to vector<8x128xf32>
    %7 = vector.extract_strided_slice %3 {offsets = [1, 0, 0], sizes = [1, 8, 128], strides = [1, 1, 1]} : vector<3x8x128xf32> to vector<1x8x128xf32>
    %8 = vector.shape_cast %7 : vector<1x8x128xf32> to vector<8x128xf32>
    %9 = arith.maximumf %6, %8 : vector<8x128xf32>
    %10 = vector.extract_strided_slice %3 {offsets = [2, 0, 0], sizes = [1, 8, 128], strides = [1, 1, 1]} : vector<3x8x128xf32> to vector<1x8x128xf32>
    %11 = vector.shape_cast %10 : vector<1x8x128xf32> to vector<8x128xf32>
    %12 = arith.maximumf %9, %11 : vector<8x128xf32>
    %13 = vector.extract_strided_slice %3 {offsets = [0, 0, 0], sizes = [1, 8, 128], strides = [1, 1, 1]} : vector<3x8x128xf32> to vector<1x8x128xf32>
    %14 = vector.shape_cast %13 : vector<1x8x128xf32> to vector<8x128xf32>
    %15 = arith.subf %14, %12 : vector<8x128xf32>
    %16 = math.exp %15 : vector<8x128xf32>
    %17 = vector.extract_strided_slice %3 {offsets = [1, 0, 0], sizes = [1, 8, 128], strides = [1, 1, 1]} : vector<3x8x128xf32> to vector<1x8x128xf32>
    %18 = vector.shape_cast %17 : vector<1x8x128xf32> to vector<8x128xf32>
    %19 = arith.subf %18, %12 : vector<8x128xf32>
    %20 = math.exp %19 : vector<8x128xf32>
    %21 = arith.addf %16, %20 : vector<8x128xf32>
    %22 = vector.extract_strided_slice %3 {offsets = [2, 0, 0], sizes = [1, 8, 128], strides = [1, 1, 1]} : vector<3x8x128xf32> to vector<1x8x128xf32>
    %23 = vector.shape_cast %22 : vector<1x8x128xf32> to vector<8x128xf32>
    %24 = arith.subf %23, %12 : vector<8x128xf32>
    %25 = math.exp %24 : vector<8x128xf32>
    %26 = arith.addf %21, %25 : vector<8x128xf32>
    %27 = math.log %26 : vector<8x128xf32>
    %28 = arith.addf %12, %27 : vector<8x128xf32>
    %cst = arith.constant 0.000000e+00 : f32
    %29 = vector.broadcast %cst : f32 to vector<8x128xf32>
    %cst_5 = arith.constant 0.000000e+00 : f32
    %30 = vector.broadcast %cst_5 : f32 to vector<8x128xf32>
    %c0_i32_6 = arith.constant 0 : i32
    %31 = vector.broadcast %c0_i32_6 : i32 to vector<8x128xi32>
    %32 = arith.cmpi eq, %4, %31 : vector<8x128xi32>
    %33 = vector.extract_strided_slice %3 {offsets = [0, 0, 0], sizes = [1, 8, 128], strides = [1, 1, 1]} : vector<3x8x128xf32> to vector<1x8x128xf32>
    %34 = vector.shape_cast %33 : vector<1x8x128xf32> to vector<8x128xf32>
    %35 = arith.subf %34, %28 : vector<8x128xf32>
    %36 = arith.select %32, %35, %29 : vector<8x128xi1>, vector<8x128xf32>
    %c0_7 = arith.constant 0 : index
    %37 = memref.load %arg4[%c0_7] : memref<3xf32, #tpu.memory_space<smem>>
    %38 = vector.broadcast %37 : f32 to vector<8x128xf32>
    %39 = arith.select %32, %38, %30 : vector<8x128xi1>, vector<8x128xf32>
    %c1_i32 = arith.constant 1 : i32
    %40 = vector.broadcast %c1_i32 : i32 to vector<8x128xi32>
    %41 = arith.cmpi eq, %4, %40 : vector<8x128xi32>
    %42 = vector.extract_strided_slice %3 {offsets = [1, 0, 0], sizes = [1, 8, 128], strides = [1, 1, 1]} : vector<3x8x128xf32> to vector<1x8x128xf32>
    %43 = vector.shape_cast %42 : vector<1x8x128xf32> to vector<8x128xf32>
    %44 = arith.subf %43, %28 : vector<8x128xf32>
    %45 = arith.select %41, %44, %36 : vector<8x128xi1>, vector<8x128xf32>
    %c1 = arith.constant 1 : index
    %46 = memref.load %arg4[%c1] : memref<3xf32, #tpu.memory_space<smem>>
    %47 = vector.broadcast %46 : f32 to vector<8x128xf32>
    %48 = arith.select %41, %47, %39 : vector<8x128xi1>, vector<8x128xf32>
    %c2_i32 = arith.constant 2 : i32
    %49 = vector.broadcast %c2_i32 : i32 to vector<8x128xi32>
    %50 = arith.cmpi eq, %4, %49 : vector<8x128xi32>
    %51 = vector.extract_strided_slice %3 {offsets = [2, 0, 0], sizes = [1, 8, 128], strides = [1, 1, 1]} : vector<3x8x128xf32> to vector<1x8x128xf32>
    %52 = vector.shape_cast %51 : vector<1x8x128xf32> to vector<8x128xf32>
    %53 = arith.subf %52, %28 : vector<8x128xf32>
    %54 = arith.select %50, %53, %45 : vector<8x128xi1>, vector<8x128xf32>
    %c2 = arith.constant 2 : index
    %55 = memref.load %arg4[%c2] : memref<3xf32, #tpu.memory_space<smem>>
    %56 = vector.broadcast %55 : f32 to vector<8x128xf32>
    %57 = arith.select %50, %56, %48 : vector<8x128xi1>, vector<8x128xf32>
    %58 = math.exp %54 : vector<8x128xf32>
    %cst_8 = arith.constant 1.000000e+00 : f32
    %59 = vector.broadcast %cst_8 : f32 to vector<8x128xf32>
    %60 = arith.subf %59, %58 : vector<8x128xf32>
    %cst_9 = arith.constant 0.000000e+00 : f32
    %61 = vector.broadcast %cst_9 : f32 to vector<8x128xf32>
    %62 = arith.maximumf %60, %61 : vector<8x128xf32>
    %63 = arith.mulf %62, %62 : vector<8x128xf32>
    %c0_10 = arith.constant 0 : index
    %c0_11 = arith.constant 0 : index
    %64 = vector.load %arg5[%c0_10, %c0_11] : memref<8x128xf32, #tpu.memory_space<vmem>>, vector<8x128xf32>
    %cst_12 = arith.constant 0.000000e+00 : f32
    %65 = vector.broadcast %cst_12 : f32 to vector<8x128xf32>
    %66 = arith.subf %65, %57 : vector<8x128xf32>
    %67 = arith.mulf %66, %63 : vector<8x128xf32>
    %68 = arith.mulf %67, %54 : vector<8x128xf32>
    %69 = arith.addf %64, %68 : vector<8x128xf32>
    %c0_13 = arith.constant 0 : index
    %c0_14 = arith.constant 0 : index
    %70 = vector.load %arg5[%c0_13, %c0_14] : memref<8x128xf32, #tpu.memory_space<vmem>>, vector<8x128xf32>
    tpu.vector_store %arg5[%c0_13, %c0_14], %69 {strides = array<i32>} : memref<8x128xf32, #tpu.memory_space<vmem>>, vector<8x128xf32>,
    return
  }
  func.func @transform_0(%arg0: i32, %arg1: i32) -> (i32, i32, i32) {
    %c1_i32 = arith.constant 1 : i32
    %0 = arith.muli %arg0, %c1_i32 : i32
    %1 = arith.addi %0, %arg1 : i32
    %c0_i32 = arith.constant 0 : i32
    %c0_i32_0 = arith.constant 0 : i32
    %c0_i32_1 = arith.constant 0 : i32
    return %c0_i32, %1, %c0_i32_0 : i32, i32, i32
  }
  func.func @transform_1(%arg0: i32, %arg1: i32) -> (i32, i32) {
    %c1_i32 = arith.constant 1 : i32
    %0 = arith.muli %arg0, %c1_i32 : i32
    %1 = arith.addi %0, %arg1 : i32
    %c0_i32 = arith.constant 0 : i32
    %c0_i32_0 = arith.constant 0 : i32
    return %1, %c0_i32 : i32, i32
  }
  func.func @transform_2(%arg0: i32, %arg1: i32) -> i32 {
    %c0_i32 = arith.constant 0 : i32
    %c0_i32_0 = arith.constant 0 : i32
    return %c0_i32 : i32
  }
  func.func @transform_3(%arg0: i32, %arg1: i32) -> (i32, i32) {
    %c0_i32 = arith.constant 0 : i32
    %c0_i32_0 = arith.constant 0 : i32
    return %arg0, %c0_i32 : i32, i32
  }
}

</mosaic_0001>

<llo_original>
// kernel: tpu_custom_call.1
$region0: #{tpu_custom_call.1}
  #allocation0 [shape = 'u32[]', space=smem, size = 0x4, offset = 0x4, fixed_abs, tag = 'smem constant byte address 0x4 - core index']
  #allocation1 [shape = 'u32[144,128]{1,0:T(1,128)}', space=vmem, size = 0x12000, scoped, tag = 'internal scratch']
  %s0 = inlined_call_operand.hbm [shape: f32[3,8,128], index: 0, kind: input, shape index: {}]
  %s1 = inlined_call_operand.hbm [shape: s32[8,128], index: 1, kind: input, shape index: {}]
  %s2 = inlined_call_operand.vmem [shape: f32[3], index: 2, kind: input, shape index: {}]
  %s3 = inlined_call_operand.hbm [shape: f32[8,128], index: 3, kind: output, shape index: {}]
  %s4 = sld [smem:[#allocation0]]
  $region38: #{tpu_custom_call.1} parent=0
    _
  %s6 = ssub.s32 1, %s4
  %s7 = scalar_select 0, %s6, %s4
  $region1: #{tpu_custom_call.1} parent=0
    #allocation2 [shape = 'u8[12288]{0}', space=vmem, size = 0x3000, scoped, tag = 'input window, operand 0, single buffered']
    #allocation3 [shape = 's32[1]{0}', space=sflag, size = 0x4, scoped, tag = 'scoped memory for tpu_custom_call.1']
    #allocation4 [shape = 's32[1]{0}', space=sflag, size = 0x4, scoped, tag = 'scoped memory for tpu_custom_call.1']
    #allocation5 [shape = 's32[1]{0}', space=sflag, size = 0x4, scoped, tag = 'scoped memory for tpu_custom_call.1']
    #allocation6 [shape = 'u8[4096]{0}', space=vmem, size = 0x1000, scoped, tag = 'input window, operand 1, single buffered']
    #allocation7 [shape = 's32[1]{0}', space=sflag, size = 0x4, scoped, tag = 'scoped memory for tpu_custom_call.1']
    #allocation8 [shape = 'u8[512]{0}', space=smem, size = 0x200, scoped, tag = 'input window, operand 2, single buffered']
    #allocation9 [shape = 'u8[4096]{0}', space=vmem, size = 0x1000, scoped, tag = 'output window, operand 0, single buffered']
    %8 = vsyncpa [#allocation3], 0
    %9 = vsyncpa [#allocation7], 0
    %10 = vsyncpa [#allocation5], 0
    %11 = vsyncpa [#allocation4], 0
    // Predicated region
    $region2: #{tpu_custom_call.1} parent=1 // pred_check
      _
    $region3: #{tpu_custom_call.1} parent=1 // pred_check_branch
      %13 = sbr.rel (0) target = $region5
    $region4: #{tpu_custom_call.1} parent=1 // pred_region
      %s14 = sadd.s32 0, 0
      %s16 = ssub.s32 384, 384
      %17 = vsyncadd [#allocation3], %s16
      %s18 = smul.addr %s14, 128
      %s19 = scalar_lea.hbm %s0, %s18
      %s20 = sshll.u32 [#allocation2], 4
      %s21 = int_to_ptr.vmem [resolvable:$true] %s20
      %26 = dma.hbm_to_vmem [thread:$0]  %s19, 384, %s21, [#allocation3], 128, 128, 8
    $region5: #{tpu_custom_call.1} parent=1 // pred_fallthru
      _
    // Predicated region
    $region6: #{tpu_custom_call.1} parent=1 // pred_check
      _
    $region7: #{tpu_custom_call.1} parent=1 // pred_check_branch
      %28 = sbr.rel (0) target = $region9
    $region8: #{tpu_custom_call.1} parent=1 // pred_region
      %s29 = sadd.s32 0, 0
      %s31 = ssub.s32 128, 128
      %32 = vsyncadd [#allocation7], %s31
      %s33 = smul.addr %s29, 128
      %s34 = scalar_lea.hbm %s1, %s33
      %s36 = sshll.u32 [#allocation6], 4
      %s37 = int_to_ptr.vmem [resolvable:$true] %s36
      %39 = dma.hbm_to_vmem [thread:$0]  %s34, 128, %s37, [#allocation7]
    $region9: #{tpu_custom_call.1} parent=1 // pred_fallthru
      _
    // Predicated region
    $region10: #{tpu_custom_call.1} parent=1 // pred_check
      _
    $region11: #{tpu_custom_call.1} parent=1 // pred_check_branch
      %41 = sbr.rel (0) target = $region13
    $region12: #{tpu_custom_call.1} parent=1 // pred_region
      %s43 = ssub.s32 16, 16
      %44 = vsyncadd [#allocation5], %s43
      %s46 = sshll.u32 %s2, 4
      %s47 = int_to_ptr.vmem [resolvable:$true] %s46
      %49 = dma.vmem_to_smem %s47, 16, [#allocation8], [#allocation5]
    $region13: #{tpu_custom_call.1} parent=1 // pred_fallthru
      _
    // Predicated region
    $region14: #{tpu_custom_call.1} parent=1 // pred_check
      _
    $region15: #{tpu_custom_call.1} parent=1 // pred_check_branch
      %51 = sbr.rel (0) target = $region17
    $region16: #{tpu_custom_call.1} parent=1 // pred_region
      %52 = dma.done [#allocation3], 384
    $region17: #{tpu_custom_call.1} parent=1 // pred_fallthru
      _
    // Predicated region
    $region18: #{tpu_custom_call.1} parent=1 // pred_check
      _
    $region19: #{tpu_custom_call.1} parent=1 // pred_check_branch
      %54 = sbr.rel (0) target = $region21
    $region20: #{tpu_custom_call.1} parent=1 // pred_region
      %55 = dma.done [#allocation7], 128
    $region21: #{tpu_custom_call.1} parent=1 // pred_fallthru
      _
    // Predicated region
    $region22: #{tpu_custom_call.1} parent=1 // pred_check
      _
    $region23: #{tpu_custom_call.1} parent=1 // pred_check_branch
      %57 = sbr.rel (0) target = $region25
    $region24: #{tpu_custom_call.1} parent=1 // pred_region
      %58 = dma.done [#allocation5], 16
    $region25: #{tpu_custom_call.1} parent=1 // pred_fallthru
      _
    %59 = sfence
    %s60 = sadd.s32 0, 0
    %s61 = sadd.s32 0, 0
    %p62 = scmp.eq.s32.totalorder 0, 0
    // Predicated region
    $region26: #{tpu_custom_call.1} parent=1 // pred_check
      %p63 = pneg %p62
    $region27: #{tpu_custom_call.1} parent=1 // pred_check_branch
      %65 = sbr.rel (%p63) target = $region29
    $region28: #{tpu_custom_call.1} parent=1 // pred_region
      %66 = vst [vmem:[#allocation9] sm:$0xff] 0.0
    $region29: #{tpu_custom_call.1} parent=1 // pred_fallthru
      _
    %v67 = vld [vmem:[#allocation2] sm:$0xff]
    %v68 = vld [vmem:[#allocation2 + $0x8] sm:$0xff]
    %v69 = vld [vmem:[#allocation2 + $0x10] sm:$0xff]
    %v70 = vld [vmem:[#allocation6] sm:$0xff]
    %v71 = vmax.f32 %v67, %v68
    %v72 = vmax.f32 %v71, %v69
    %v73 = vsub.f32 %v67, %v72
    %v74 = vmul.f32 %v73, 1.442695
    %v75 = vpow.pop %v74
    %v76 = vsub.f32 %v68, %v72
    %v77 = vmul.f32 %v76, 1.442695
    %v78 = vpow.pop %v77
    %v79 = vadd.f32 %v75, %v78
    %v80 = vsub.f32 %v69, %v72
    %v81 = vmul.f32 %v80, 1.442695
    %v82 = vpow.pop %v81
    %v83 = vadd.f32 %v79, %v82
    %v84 = vlog2.pop %v83
    %v85 = vmul.f32 %v84, 0.6931472
    %v86 = vadd.f32 %v72, %v85
    %vm87 = vcmp.eq.s32.totalorder %v70, 0
    %v88 = vsub.f32 %v67, %v86
    %v89 = vsel %vm87, %v88, 0.0
    %s90 = sld [smem:[#allocation8]]
    %v91 = vstv %s90
    %v92 = vsel %vm87, %v91, 0.0
    %vm93 = vcmp.eq.s32.totalorder %v70, 1
    %v94 = vsub.f32 %v68, %v86
    %v95 = vsel %vm93, %v94, %v89
    %s96 = sld [smem:[#allocation8 + $0x1]]
    %v97 = vstv %s96
    %v98 = vsel %vm93, %v97, %v92
    %vm99 = vcmp.eq.s32.totalorder %v70, 2
    %v100 = vsub.f32 %v69, %v86
    %v101 = vsel %vm99, %v100, %v95
    %s102 = sld [smem:[#allocation8 + $0x2]]
    %v103 = vstv %s102
    %v104 = vsel %vm99, %v103, %v98
    %v105 = vmul.f32 %v101, 1.442695
    %v106 = vpow.pop %v105
    %v107 = vsub.f32 1.0, %v106
    %v108 = vmax.f32 %v107, 0.0
    %v109 = vmul.f32 %v108, %v108
    %v110 = vld [vmem:[#allocation9] sm:$0xff]
    %v111 = vsub.f32 0.0, %v104
    %v112 = vmul.f32 %v111, %v109
    %v113 = vmul.f32 %v112, %v101
    %v114 = vadd.f32 %v110, %v113
    %115 = vst [vmem:[#allocation9] sm:$0xff] %v114
    // Predicated region
    $region30: #{tpu_custom_call.1} parent=1 // pred_check
      _
    $region31: #{tpu_custom_call.1} parent=1 // pred_check_branch
      %117 = sbr.rel (0) target = $region33
    $region32: #{tpu_custom_call.1} parent=1 // pred_region
      %s119 = ssub.s32 128, 128
      %120 = vsyncadd [#allocation4], %s119
      %s122 = sshll.u32 [#allocation9], 4
      %s123 = int_to_ptr.vmem [resolvable:$true] %s122
      %125 = dma.vmem_to_hbm [thread:$0]  %s123, 128, %s3, [#allocation4]
    $region33: #{tpu_custom_call.1} parent=1 // pred_fallthru
      _
    // Predicated region
    $region34: #{tpu_custom_call.1} parent=1 // pred_check
      _
    $region35: #{tpu_custom_call.1} parent=1 // pred_check_branch
      %127 = sbr.rel (0) target = $region37
    $region36: #{tpu_custom_call.1} parent=1 // pred_region
      %128 = dma.done [#allocation4], 128
    $region37: #{tpu_custom_call.1} parent=1 // pred_fallthru
      _
    %129 = vsyncpa [#allocation3], 1
    %130 = vsyncpa [#allocation7], 1
    %131 = vsyncpa [#allocation4], 1
    %132 = vsyncpa [#allocation5], 1

</llo_original>
